<compile_context>
chip_gen: v7x
topology: tpu7x:2x2x1
jax: 0.10.0
libtpu: 0.0.40
codegen_flags: <defaults>
</compile_context>

<pallas_src>
import jax
import jax.numpy as jnp
from jax.experimental import pallas as pl
from jax.experimental.pallas import tpu as pltpu

# ----- synthetic config (scaled down from YOLO S=7, C_in=1024, hidden=4096) -----
S = 4
C_IN = 64
HIDDEN = 128
B_BOX = 2
C_CLS = 6
DEPTH = B_BOX * 5 + C_CLS          # 16
D_IN = S * S * C_IN                # 1024
D_OUT = S * S * DEPTH              # 256  (lane-dense: multiple of 128)
N = 2                              # batch


def head_kernel(x_ref, w1_ref, b1_ref, w2_ref, b2_ref, o_ref):
    # First linear: bf16 MXU matmul (x pre-cast in wrapper), f32 accumulation.
    h = jnp.dot(x_ref[...], w1_ref[...], preferred_element_type=jnp.float32)
    h = h + b1_ref[...]                      # full (8, HIDDEN) tile, unmasked add
    # TODO(synk): Dropout(p=0.5) is identity in eval mode; training-mode masking
    # would need pltpu.prng_seed/prng_random_bits and is not implemented.
    # LeakyReLU(negative_slope=0.1) in f32 on the VPU.
    h = jnp.where(h > 0, h, 0.1 * h)
    # Second linear: bf16 MXU matmul, f32 accumulation.
    y = jnp.dot(h.astype(jnp.bfloat16), w2_ref[...],
                preferred_element_type=jnp.float32)
    y = y + b2_ref[...]                      # full (8, D_OUT) tile, unmasked add
    # Sigmoid via a single EUP op (exact identity): sigmoid(y) = 0.5*tanh(0.5*y)+0.5.
    o_ref[...] = (0.5 * jnp.tanh(0.5 * y) + 0.5).astype(o_ref.dtype)


def head_forward(x_nchw, w1_bf16, b1, w2_bf16, b2):
    """x_nchw: (N, C_IN, S, S) float32 -> (N, S, S, DEPTH) float32."""
    n = x_nchw.shape[0]
    # nn.Flatten on NCHW: row-major flatten over (C, H, W) — identical to jnp.reshape.
    x_flat = x_nchw.reshape(n, D_IN)

    # Pad batch rows to a full sublane group (multiple of 8) so the output
    # store is an unmasked vst; padded rows are dead work, sliced off below.
    # Activations are stored bf16 so the kernel DMAs half the bytes.
    m_pad = ((n + 7) // 8) * 8
    x_pad = (jnp.zeros((m_pad, D_IN), jnp.float32).at[:n].set(x_flat)
             .astype(jnp.bfloat16))

    # Pre-broadcast biases to full sublane-group tiles (no masked (1, N) loads).
    b1_b = jnp.broadcast_to(b1, (m_pad, HIDDEN))
    b2_b = jnp.broadcast_to(b2, (m_pad, D_OUT))

    cost = pl.CostEstimate(
        flops=2 * m_pad * D_IN * HIDDEN + 2 * m_pad * HIDDEN * D_OUT,
        transcendentals=m_pad * D_OUT,
        bytes_accessed=(x_pad.size * 2          # x   (bf16)
                        + w1_bf16.size * 2      # W1  (bf16)
                        + b1_b.size * 4
                        + w2_bf16.size * 2      # W2  (bf16)
                        + b2_b.size * 4
                        + m_pad * D_OUT * 4),   # out (f32)
    )

    # Gridless single-shot call: whole arrays land in VMEM once, no pipeline
    # double-buffering, no grid-step overhead.
    vmem = pl.BlockSpec(memory_space=pltpu.MemorySpace.VMEM)
    out_flat = pl.pallas_call(
        head_kernel,
        out_shape=jax.ShapeDtypeStruct((m_pad, D_OUT), jnp.float32),
        in_specs=[vmem, vmem, vmem, vmem, vmem],
        out_specs=vmem,
        cost_estimate=cost,
    )(x_pad, w1_bf16, b1_b, w2_bf16, b2_b)

    return out_flat[:n].reshape(n, S, S, DEPTH)


def init_params(key):
    """Deterministic params; shapes match nn.Linear(D_IN, HIDDEN), nn.Linear(HIDDEN, D_OUT).
    Weights are stored pre-transposed (in, out) and in bf16; biases stay f32."""
    k1, k2, k3, k4 = jax.random.split(key, 4)
    w1 = (jax.random.normal(k1, (D_IN, HIDDEN), jnp.float32)
          * (1.0 / jnp.sqrt(D_IN))).astype(jnp.bfloat16)
    b1 = jax.random.normal(k2, (1, HIDDEN), jnp.float32) * 0.01
    w2 = (jax.random.normal(k3, (HIDDEN, D_OUT), jnp.float32)
          * (1.0 / jnp.sqrt(HIDDEN))).astype(jnp.bfloat16)
    b2 = jax.random.normal(k4, (1, D_OUT), jnp.float32) * 0.01
    return w1, b1, w2, b2


if __name__ == "__main__":
    key = jax.random.PRNGKey(0)
    kx, kp = jax.random.split(key)
    x = jax.random.normal(kx, (N, C_IN, S, S), jnp.float32)
    w1, b1, w2, b2 = init_params(kp)

    out = head_forward(x, w1, b1, w2, b2)
    out = jax.block_until_ready(out)

    # Reference check against plain JAX (same math as the PyTorch module in eval
    # mode). Use the same bf16-quantized x/weights upcast to f32 so the only
    # deviation is the bf16 MXU matmul rounding (sigmoid is computed exactly).
    x_flat = x.reshape(N, D_IN).astype(jnp.bfloat16).astype(jnp.float32)
    h_ref = x_flat @ w1.astype(jnp.float32) + b1
    h_ref = jnp.where(h_ref > 0, h_ref, 0.1 * h_ref)
    y_ref = jax.nn.sigmoid(h_ref.astype(jnp.bfloat16).astype(jnp.float32)
                           @ w2.astype(jnp.float32) + b2)
    y_ref = y_ref.reshape(N, S, S, DEPTH)

    assert out.shape == (N, S, S, DEPTH)
    assert jnp.allclose(out, y_ref, atol=1e-2, rtol=1e-2)

    print("KERNEL_OK")
</pallas_src>

<mosaic_0001>
module attributes {stable_mosaic.version = 11 : i64} {
  func.func @head_kernel(%arg0: memref<8x1024xbf16, #tpu.memory_space<vmem>>, %arg1: memref<1024x128xbf16, #tpu.memory_space<vmem>>, %arg2: memref<8x128xf32, #tpu.memory_space<vmem>>, %arg3: memref<128x256xbf16, #tpu.memory_space<vmem>>, %arg4: memref<8x256xf32, #tpu.memory_space<vmem>>, %arg5: memref<8x256xf32, #tpu.memory_space<vmem>>) attributes {dimension_semantics = [], scalar_prefetch = 0 : i64, scratch_operands = 0 : i64, tpu.core_type = #tpu.core_type<tc>} {
    %c0 = arith.constant 0 : index
    %c0_0 = arith.constant 0 : index
    %0 = vector.load %arg0[%c0, %c0_0] : memref<8x1024xbf16, #tpu.memory_space<vmem>>, vector<8x1024xbf16>
    %c0_1 = arith.constant 0 : index
    %c0_2 = arith.constant 0 : index
    %1 = vector.load %arg1[%c0_1, %c0_2] : memref<1024x128xbf16, #tpu.memory_space<vmem>>, vector<1024x128xbf16>
    %cst = arith.constant dense<0.000000e+00> : vector<8x128xf32>
    %2 = tpu.matmul %0, %1, %cst {dimension_numbers = #tpu.dot_dimension_numbers<[1], [0], [0], [1], [0, 0, 1, 1], [], []>} : vector<8x1024xbf16>, vector<1024x128xbf16>, vector<8x128xf32> -> vector<8x128xf32>
    %c0_3 = arith.constant 0 : index
    %c0_4 = arith.constant 0 : index
    %3 = vector.load %arg2[%c0_3, %c0_4] : memref<8x128xf32, #tpu.memory_space<vmem>>, vector<8x128xf32>
    %4 = arith.addf %2, %3 : vector<8x128xf32>
    %cst_5 = arith.constant 0.000000e+00 : f32
    %5 = vector.broadcast %cst_5 : f32 to vector<8x128xf32>
    %6 = arith.cmpf ogt, %4, %5 : vector<8x128xf32>
    %cst_6 = arith.constant 1.000000e-01 : f32
    %7 = vector.broadcast %cst_6 : f32 to vector<8x128xf32>
    %8 = arith.mulf %7, %4 : vector<8x128xf32>
    %9 = arith.select %6, %4, %8 : vector<8x128xi1>, vector<8x128xf32>
    %10 = arith.truncf %9 : vector<8x128xf32> to vector<8x128xbf16>
    %c0_7 = arith.constant 0 : index
    %c0_8 = arith.constant 0 : index
    %11 = vector.load %arg3[%c0_7, %c0_8] : memref<128x256xbf16, #tpu.memory_space<vmem>>, vector<128x256xbf16>
    %cst_9 = arith.constant dense<0.000000e+00> : vector<8x256xf32>
    %12 = tpu.matmul %10, %11, %cst_9 {dimension_numbers = #tpu.dot_dimension_numbers<[1], [0], [0], [1], [0, 0, 1, 1], [], []>} : vector<8x128xbf16>, vector<128x256xbf16>, vector<8x256xf32> -> vector<8x256xf32>
    %c0_10 = arith.constant 0 : index
    %c0_11 = arith.constant 0 : index
    %13 = vector.load %arg4[%c0_10, %c0_11] : memref<8x256xf32, #tpu.memory_space<vmem>>, vector<8x256xf32>
    %14 = arith.addf %12, %13 : vector<8x256xf32>
    %cst_12 = arith.constant 5.000000e-01 : f32
    %15 = vector.broadcast %cst_12 : f32 to vector<8x256xf32>
    %16 = arith.mulf %15, %14 : vector<8x256xf32>
    %17 = math.tanh %16 : vector<8x256xf32>
    %cst_13 = arith.constant 5.000000e-01 : f32
    %18 = vector.broadcast %cst_13 : f32 to vector<8x256xf32>
    %19 = arith.mulf %18, %17 : vector<8x256xf32>
    %cst_14 = arith.constant 5.000000e-01 : f32
    %20 = vector.broadcast %cst_14 : f32 to vector<8x256xf32>
    %21 = arith.addf %19, %20 : vector<8x256xf32>
    %c0_15 = arith.constant 0 : index
    %c0_16 = arith.constant 0 : index
    %22 = vector.load %arg5[%c0_15, %c0_16] : memref<8x256xf32, #tpu.memory_space<vmem>>, vector<8x256xf32>
    tpu.vector_store %arg5[%c0_15, %c0_16], %21 {strides = array<i32>} : memref<8x256xf32, #tpu.memory_space<vmem>>, vector<8x256xf32>,
    return
  }
}

</mosaic_0001>

<llo_original>
// kernel: tpu_custom_call.1
$region0: #{tpu_custom_call.1}
  #allocation0 [shape = 'u32[]', space=smem, size = 0x4, offset = 0x4, fixed_abs, tag = 'smem constant byte address 0x4 - core index']
  #allocation1 [shape = 'u32[144,128]{1,0:T(1,128)}', space=vmem, size = 0x12000, scoped, tag = 'internal scratch']
  %s0 = inlined_call_operand.hbm [shape: bf16[8,1024], index: 0, kind: input, shape index: {}]
  %s1 = inlined_call_operand.hbm [shape: bf16[1024,128], index: 1, kind: input, shape index: {}]
  %s2 = inlined_call_operand.hbm [shape: f32[8,128], index: 2, kind: input, shape index: {}]
  %s3 = inlined_call_operand.hbm [shape: bf16[128,256], index: 3, kind: input, shape index: {}]
  %s4 = inlined_call_operand.hbm [shape: f32[8,256], index: 4, kind: input, shape index: {}]
  %s5 = inlined_call_operand.hbm [shape: f32[8,256], index: 5, kind: output, shape index: {}]
  %s6 = sld [smem:[#allocation0]]
  $region50: #{tpu_custom_call.1} parent=0
    _
  %s8 = ssub.s32 1, %s6
  %s9 = scalar_select 0, %s8, %s6
  $region1: #{tpu_custom_call.1} parent=0
    #allocation2 [shape = 'u8[16384]{0}', space=vmem, size = 0x4000, scoped, tag = 'input window, operand 0, single buffered']
    #allocation3 [shape = 's32[1]{0}', space=sflag, size = 0x4, scoped, tag = 'scoped memory for tpu_custom_call.1']
    #allocation4 [shape = 's32[1]{0}', space=sflag, size = 0x4, scoped, tag = 'scoped memory for tpu_custom_call.1']
    #allocation5 [shape = 'u8[262144]{0}', space=vmem, size = 0x40000, scoped, tag = 'input window, operand 1, single buffered']
    #allocation6 [shape = 's32[1]{0}', space=sflag, size = 0x4, scoped, tag = 'scoped memory for tpu_custom_call.1']
    #allocation7 [shape = 'u8[4096]{0}', space=vmem, size = 0x1000, scoped, tag = 'input window, operand 2, single buffered']
    #allocation8 [shape = 'u8[65536]{0}', space=vmem, size = 0x10000, scoped, tag = 'input window, operand 3, single buffered']
    #allocation9 [shape = 's32[1]{0}', space=sflag, size = 0x4, scoped, tag = 'scoped memory for tpu_custom_call.1']
    #allocation10 [shape = 'u8[8192]{0}', space=vmem, size = 0x2000, scoped, tag = 'input window, operand 4, single buffered']
    #allocation11 [shape = 'u8[8192]{0}', space=vmem, size = 0x2000, scoped, tag = 'output window, operand 0, single buffered']
    %10 = vsyncpa [#allocation3], 0
    %11 = vsyncpa [#allocation6], 0
    %12 = vsyncpa [#allocation9], 0
    %13 = vsyncpa [#allocation4], 0
    // Predicated region
    $region2: #{tpu_custom_call.1} parent=1 // pred_check
      _
    $region3: #{tpu_custom_call.1} parent=1 // pred_check_branch
      %15 = sbr.rel (0) target = $region5
    $region4: #{tpu_custom_call.1} parent=1 // pred_region
      %s17 = ssub.s32 512, 512
      %18 = vsyncadd [#allocation3], %s17
      %s20 = sshll.u32 [#allocation2], 4
      %s21 = int_to_ptr.vmem [resolvable:$true] %s20
      %23 = dma.hbm_to_vmem [thread:$0]  %s0, 512, %s21, [#allocation3]
    $region5: #{tpu_custom_call.1} parent=1 // pred_fallthru
      _
    // Predicated region
    $region6: #{tpu_custom_call.1} parent=1 // pred_check
      _
    $region7: #{tpu_custom_call.1} parent=1 // pred_check_branch
      %25 = sbr.rel (0) target = $region9
    $region8: #{tpu_custom_call.1} parent=1 // pred_region
      %s27 = ssub.s32 8192, 8192
      %28 = vsyncadd [#allocation6], %s27
      %s29 = sshll.u32 [#allocation5], 4
      %s30 = int_to_ptr.vmem [resolvable:$true] %s29
      %35 = dma.hbm_to_vmem [thread:$0]  %s1, 8192, %s30, [#allocation6], 64, 64, 4
    $region9: #{tpu_custom_call.1} parent=1 // pred_fallthru
      _
    // Predicated region
    $region10: #{tpu_custom_call.1} parent=1 // pred_check
      _
    $region11: #{tpu_custom_call.1} parent=1 // pred_check_branch
      %37 = sbr.rel (0) target = $region13
    $region12: #{tpu_custom_call.1} parent=1 // pred_region
      %s39 = ssub.s32 128, 128
      %40 = vsyncadd [#allocation6], %s39
      %s42 = sshll.u32 [#allocation7], 4
      %s43 = int_to_ptr.vmem [resolvable:$true] %s42
      %45 = dma.hbm_to_vmem [thread:$0]  %s2, 128, %s43, [#allocation6]
    $region13: #{tpu_custom_call.1} parent=1 // pred_fallthru
      _
    // Predicated region
    $region14: #{tpu_custom_call.1} parent=1 // pred_check
      _
    $region15: #{tpu_custom_call.1} parent=1 // pred_check_branch
      %47 = sbr.rel (0) target = $region17
    $region16: #{tpu_custom_call.1} parent=1 // pred_region
      %s49 = ssub.s32 2048, 2048
      %50 = vsyncadd [#allocation9], %s49
      %s51 = sshll.u32 [#allocation8], 4
      %s52 = int_to_ptr.vmem [resolvable:$true] %s51
      %57 = dma.hbm_to_vmem [thread:$0]  %s3, 2048, %s52, [#allocation9], 128, 128, 8
    $region17: #{tpu_custom_call.1} parent=1 // pred_fallthru
      _
    // Predicated region
    $region18: #{tpu_custom_call.1} parent=1 // pred_check
      _
    $region19: #{tpu_custom_call.1} parent=1 // pred_check_branch
      %59 = sbr.rel (0) target = $region21
    $region20: #{tpu_custom_call.1} parent=1 // pred_region
      %s61 = ssub.s32 256, 256
      %62 = vsyncadd [#allocation9], %s61
      %s64 = sshll.u32 [#allocation10], 4
      %s65 = int_to_ptr.vmem [resolvable:$true] %s64
      %67 = dma.hbm_to_vmem [thread:$0]  %s4, 256, %s65, [#allocation9]
    $region21: #{tpu_custom_call.1} parent=1 // pred_fallthru
      _
    // Predicated region
    $region22: #{tpu_custom_call.1} parent=1 // pred_check
      _
    $region23: #{tpu_custom_call.1} parent=1 // pred_check_branch
      %69 = sbr.rel (0) target = $region25
    $region24: #{tpu_custom_call.1} parent=1 // pred_region
      %70 = dma.done [#allocation3], 512
    $region25: #{tpu_custom_call.1} parent=1 // pred_fallthru
      _
    // Predicated region
    $region26: #{tpu_custom_call.1} parent=1 // pred_check
      _
    $region27: #{tpu_custom_call.1} parent=1 // pred_check_branch
      %72 = sbr.rel (0) target = $region29
    $region28: #{tpu_custom_call.1} parent=1 // pred_region
      %73 = dma.done [#allocation6], 8192
    $region29: #{tpu_custom_call.1} parent=1 // pred_fallthru
      _
    // Predicated region
    $region30: #{tpu_custom_call.1} parent=1 // pred_check
      _
    $region31: #{tpu_custom_call.1} parent=1 // pred_check_branch
      %75 = sbr.rel (0) target = $region33
    $region32: #{tpu_custom_call.1} parent=1 // pred_region
      %76 = dma.done [#allocation6], 128
    $region33: #{tpu_custom_call.1} parent=1 // pred_fallthru
      _
    // Predicated region
    $region34: #{tpu_custom_call.1} parent=1 // pred_check
      _
    $region35: #{tpu_custom_call.1} parent=1 // pred_check_branch
      %78 = sbr.rel (0) target = $region37
    $region36: #{tpu_custom_call.1} parent=1 // pred_region
      %79 = dma.done [#allocation9], 2048
    $region37: #{tpu_custom_call.1} parent=1 // pred_fallthru
      _
    // Predicated region
    $region38: #{tpu_custom_call.1} parent=1 // pred_check
      _
    $region39: #{tpu_custom_call.1} parent=1 // pred_check_branch
      %81 = sbr.rel (0) target = $region41
    $region40: #{tpu_custom_call.1} parent=1 // pred_region
      %82 = dma.done [#allocation9], 256
    $region41: #{tpu_custom_call.1} parent=1 // pred_fallthru
      _
    %v84 = vld [vmem:[#allocation2] sm:$0xff]
    %v85 = vld [vmem:[#allocation2 + $0x8] sm:$0xff]
    %v86 = vld [vmem:[#allocation2 + $0x10] sm:$0xff]
    %v87 = vld [vmem:[#allocation2 + $0x18] sm:$0xff]
    %v88 = vld [vmem:[#allocation5] sm:$0xf]
    %v89 = vld [vmem:[#allocation5 + $0x4] sm:$0xf]
    %v90 = vld [vmem:[#allocation5 + $0x8] sm:$0xf]
    %v91 = vld [vmem:[#allocation5 + $0xc] sm:$0xf]
    %v92 = vld [vmem:[#allocation5 + $0x10] sm:$0xf]
    %v93 = vld [vmem:[#allocation5 + $0x14] sm:$0xf]
    %v94 = vld [vmem:[#allocation5 + $0x18] sm:$0xf]
    %v95 = vld [vmem:[#allocation5 + $0x1c] sm:$0xf]
    %v96 = vld [vmem:[#allocation5 + $0x20] sm:$0xf]
    %v97 = vld [vmem:[#allocation5 + $0x24] sm:$0xf]
    %v98 = vld [vmem:[#allocation5 + $0x28] sm:$0xf]
    %v99 = vld [vmem:[#allocation5 + $0x2c] sm:$0xf]
    %v100 = vld [vmem:[#allocation5 + $0x30] sm:$0xf]
    %v101 = vld [vmem:[#allocation5 + $0x34] sm:$0xf]
    %v102 = vld [vmem:[#allocation5 + $0x38] sm:$0xf]
    %v103 = vld [vmem:[#allocation5 + $0x3c] sm:$0xf]
    %v104 = vld [vmem:[#allocation5 + $0x40] sm:$0xf]
    %v105 = vld [vmem:[#allocation5 + $0x44] sm:$0xf]
    %v106 = vld [vmem:[#allocation5 + $0x48] sm:$0xf]
    %v107 = vld [vmem:[#allocation5 + $0x4c] sm:$0xf]
    %v108 = vld [vmem:[#allocation5 + $0x50] sm:$0xf]
    %v109 = vld [vmem:[#allocation5 + $0x54] sm:$0xf]
    %v110 = vld [vmem:[#allocation5 + $0x58] sm:$0xf]
    %v111 = vld [vmem:[#allocation5 + $0x5c] sm:$0xf]
    %v112 = vld [vmem:[#allocation5 + $0x60] sm:$0xf]
    %v113 = vld [vmem:[#allocation5 + $0x64] sm:$0xf]
    %v114 = vld [vmem:[#allocation5 + $0x68] sm:$0xf]
    %v115 = vld [vmem:[#allocation5 + $0x6c] sm:$0xf]
    %v116 = vld [vmem:[#allocation5 + $0x70] sm:$0xf]
    %v117 = vld [vmem:[#allocation5 + $0x74] sm:$0xf]
    %v118 = vld [vmem:[#allocation5 + $0x78] sm:$0xf]
    %v119 = vld [vmem:[#allocation5 + $0x7c] sm:$0xf]
    %v120 = vld [vmem:[#allocation5 + $0x80] sm:$0xf]
    %v121 = vld [vmem:[#allocation5 + $0x84] sm:$0xf]
    %v122 = vld [vmem:[#allocation5 + $0x88] sm:$0xf]
    %v123 = vld [vmem:[#allocation5 + $0x8c] sm:$0xf]
    %v124 = vld [vmem:[#allocation5 + $0x90] sm:$0xf]
    %v125 = vld [vmem:[#allocation5 + $0x94] sm:$0xf]
    %v126 = vld [vmem:[#allocation5 + $0x98] sm:$0xf]
    %v127 = vld [vmem:[#allocation5 + $0x9c] sm:$0xf]
    %v128 = vld [vmem:[#allocation5 + $0xa0] sm:$0xf]
    %v129 = vld [vmem:[#allocation5 + $0xa4] sm:$0xf]
    %v130 = vld [vmem:[#allocation5 + $0xa8] sm:$0xf]
    %v131 = vld [vmem:[#allocation5 + $0xac] sm:$0xf]
    %v132 = vld [vmem:[#allocation5 + $0xb0] sm:$0xf]
    %v133 = vld [vmem:[#allocation5 + $0xb4] sm:$0xf]
    %v134 = vld [vmem:[#allocation5 + $0xb8] sm:$0xf]
    %v135 = vld [vmem:[#allocation5 + $0xbc] sm:$0xf]
    %v136 = vld [vmem:[#allocation5 + $0xc0] sm:$0xf]
    %v137 = vld [vmem:[#allocation5 + $0xc4] sm:$0xf]
    %v138 = vld [vmem:[#allocation5 + $0xc8] sm:$0xf]
    %v139 = vld [vmem:[#allocation5 + $0xcc] sm:$0xf]
    %v140 = vld [vmem:[#allocation5 + $0xd0] sm:$0xf]
    %v141 = vld [vmem:[#allocation5 + $0xd4] sm:$0xf]
    %v142 = vld [vmem:[#allocation5 + $0xd8] sm:$0xf]
    %v143 = vld [vmem:[#allocation5 + $0xdc] sm:$0xf]
    %v144 = vld [vmem:[#allocation5 + $0xe0] sm:$0xf]
    %v145 = vld [vmem:[#allocation5 + $0xe4] sm:$0xf]
    %v146 = vld [vmem:[#allocation5 + $0xe8] sm:$0xf]
    %v147 = vld [vmem:[#allocation5 + $0xec] sm:$0xf]
    %v148 = vld [vmem:[#allocation5 + $0xf0] sm:$0xf]
    %v149 = vld [vmem:[#allocation5 + $0xf4] sm:$0xf]
    %v150 = vld [vmem:[#allocation5 + $0xf8] sm:$0xf]
    %v151 = vld [vmem:[#allocation5 + $0xfc] sm:$0xf]
    %v152 = vld [vmem:[#allocation5 + $0x100] sm:$0xf]
    %v153 = vld [vmem:[#allocation5 + $0x104] sm:$0xf]
    %v154 = vld [vmem:[#allocation5 + $0x108] sm:$0xf]
    %v155 = vld [vmem:[#allocation5 + $0x10c] sm:$0xf]
    %v156 = vld [vmem:[#allocation5 + $0x110] sm:$0xf]
    %v157 = vld [vmem:[#allocation5 + $0x114] sm:$0xf]
    %v158 = vld [vmem:[#allocation5 + $0x118] sm:$0xf]
    %v159 = vld [vmem:[#allocation5 + $0x11c] sm:$0xf]
    %v160 = vld [vmem:[#allocation5 + $0x120] sm:$0xf]
    %v161 = vld [vmem:[#allocation5 + $0x124] sm:$0xf]
    %v162 = vld [vmem:[#allocation5 + $0x128] sm:$0xf]
    %v163 = vld [vmem:[#allocation5 + $0x12c] sm:$0xf]
    %v164 = vld [vmem:[#allocation5 + $0x130] sm:$0xf]
    %v165 = vld [vmem:[#allocation5 + $0x134] sm:$0xf]
    %v166 = vld [vmem:[#allocation5 + $0x138] sm:$0xf]
    %v167 = vld [vmem:[#allocation5 + $0x13c] sm:$0xf]
    %v168 = vld [vmem:[#allocation5 + $0x140] sm:$0xf]
    %v169 = vld [vmem:[#allocation5 + $0x144] sm:$0xf]
    %v170 = vld [vmem:[#allocation5 + $0x148] sm:$0xf]
    %v171 = vld [vmem:[#allocation5 + $0x14c] sm:$0xf]
    %v172 = vld [vmem:[#allocation5 + $0x150] sm:$0xf]
    %v173 = vld [vmem:[#allocation5 + $0x154] sm:$0xf]
    %v174 = vld [vmem:[#allocation5 + $0x158] sm:$0xf]
    %v175 = vld [vmem:[#allocation5 + $0x15c] sm:$0xf]
    %v176 = vld [vmem:[#allocation5 + $0x160] sm:$0xf]
    %v177 = vld [vmem:[#allocation5 + $0x164] sm:$0xf]
    %v178 = vld [vmem:[#allocation5 + $0x168] sm:$0xf]
    %v179 = vld [vmem:[#allocation5 + $0x16c] sm:$0xf]
    %v180 = vld [vmem:[#allocation5 + $0x170] sm:$0xf]
    %v181 = vld [vmem:[#allocation5 + $0x174] sm:$0xf]
    %v182 = vld [vmem:[#allocation5 + $0x178] sm:$0xf]
    %v183 = vld [vmem:[#allocation5 + $0x17c] sm:$0xf]
    %v184 = vld [vmem:[#allocation5 + $0x180] sm:$0xf]
    %v185 = vld [vmem:[#allocation5 + $0x184] sm:$0xf]
    %v186 = vld [vmem:[#allocation5 + $0x188] sm:$0xf]
    %v187 = vld [vmem:[#allocation5 + $0x18c] sm:$0xf]
    %v188 = vld [vmem:[#allocation5 + $0x190] sm:$0xf]
    %v189 = vld [vmem:[#allocation5 + $0x194] sm:$0xf]
    %v190 = vld [vmem:[#allocation5 + $0x198] sm:$0xf]
    %v191 = vld [vmem:[#allocation5 + $0x19c] sm:$0xf]
    %v192 = vld [vmem:[#allocation5 + $0x1a0] sm:$0xf]
    %v193 = vld [vmem:[#allocation5 + $0x1a4] sm:$0xf]
    %v194 = vld [vmem:[#allocation5 + $0x1a8] sm:$0xf]
    %v195 = vld [vmem:[#allocation5 + $0x1ac] sm:$0xf]
    %v196 = vld [vmem:[#allocation5 + $0x1b0] sm:$0xf]
    %v197 = vld [vmem:[#allocation5 + $0x1b4] sm:$0xf]
    %v198 = vld [vmem:[#allocation5 + $0x1b8] sm:$0xf]
    %v199 = vld [vmem:[#allocation5 + $0x1bc] sm:$0xf]
    %v200 = vld [vmem:[#allocation5 + $0x1c0] sm:$0xf]
    %v201 = vld [vmem:[#allocation5 + $0x1c4] sm:$0xf]
    %v202 = vld [vmem:[#allocation5 + $0x1c8] sm:$0xf]
    %v203 = vld [vmem:[#allocation5 + $0x1cc] sm:$0xf]
    %v204 = vld [vmem:[#allocation5 + $0x1d0] sm:$0xf]
    %v205 = vld [vmem:[#allocation5 + $0x1d4] sm:$0xf]
    %v206 = vld [vmem:[#allocation5 + $0x1d8] sm:$0xf]
    %v207 = vld [vmem:[#allocation5 + $0x1dc] sm:$0xf]
    %v208 = vld [vmem:[#allocation5 + $0x1e0] sm:$0xf]
    %v209 = vld [vmem:[#allocation5 + $0x1e4] sm:$0xf]
    %v210 = vld [vmem:[#allocation5 + $0x1e8] sm:$0xf]
    %v211 = vld [vmem:[#allocation5 + $0x1ec] sm:$0xf]
    %v212 = vld [vmem:[#allocation5 + $0x1f0] sm:$0xf]
    %v213 = vld [vmem:[#allocation5 + $0x1f4] sm:$0xf]
    %v214 = vld [vmem:[#allocation5 + $0x1f8] sm:$0xf]
    %v215 = vld [vmem:[#allocation5 + $0x1fc] sm:$0xf]
    %v216 = vld [vmem:[#allocation7] sm:$0xff]
    %v221 = vunpack.c.l.b16 %v84
    %v222 = vunpack.c.h.b16 %v84
    %v223 = vunpack.c.l.b16 %v85
    %v224 = vunpack.c.h.b16 %v85
    %v225 = vunpack.c.l.b16 %v86
    %v226 = vunpack.c.h.b16 %v86
    %v227 = vunpack.c.l.b16 %v87
    %v228 = vunpack.c.h.b16 %v87
    %v229 = vpack.c.b16 %v221, %v221
    %v230 = vpack.c.b16 %v222, %v222
    %v231 = vpack.c.b16 %v223, %v223
    %v232 = vpack.c.b16 %v224, %v224
    %v233 = vpack.c.b16 %v225, %v225
    %v234 = vpack.c.b16 %v226, %v226
    %v235 = vpack.c.b16 %v227, %v227
    %v236 = vpack.c.b16 %v228, %v228
    %v373 = vunpack.c.l.b16 %v88
    %v374 = vunpack.c.l.b16 %v89
    %v375 = vunpack.c.l.b16 %v90
    %v376 = vunpack.c.l.b16 %v91
    %v377 = vunpack.c.l.b16 %v92
    %v378 = vunpack.c.l.b16 %v93
    %v379 = vunpack.c.l.b16 %v94
    %v380 = vunpack.c.l.b16 %v95
    %v381 = vunpack.c.l.b16 %v96
    %v382 = vunpack.c.l.b16 %v97
    %v383 = vunpack.c.l.b16 %v98
    %v384 = vunpack.c.l.b16 %v99
    %v385 = vunpack.c.l.b16 %v100
    %v386 = vunpack.c.l.b16 %v101
    %v387 = vunpack.c.l.b16 %v102
    %v388 = vunpack.c.l.b16 %v103
    %v389 = vunpack.c.l.b16 %v104
    %v390 = vunpack.c.l.b16 %v105
    %v391 = vunpack.c.l.b16 %v106
    %v392 = vunpack.c.l.b16 %v107
    %v393 = vunpack.c.l.b16 %v108
    %v394 = vunpack.c.l.b16 %v109
    %v395 = vunpack.c.l.b16 %v110
    %v396 = vunpack.c.l.b16 %v111
    %v397 = vunpack.c.l.b16 %v112
    %v398 = vunpack.c.l.b16 %v113
    %v399 = vunpack.c.l.b16 %v114
    %v400 = vunpack.c.l.b16 %v115
    %v401 = vunpack.c.l.b16 %v116
    %v402 = vunpack.c.l.b16 %v117
    %v403 = vunpack.c.l.b16 %v118
    %v404 = vunpack.c.l.b16 %v119
    %v405 = vunpack.c.l.b16 %v120
    %v406 = vunpack.c.l.b16 %v121
    %v407 = vunpack.c.l.b16 %v122
    %v408 = vunpack.c.l.b16 %v123
    %v409 = vunpack.c.l.b16 %v124
    %v410 = vunpack.c.l.b16 %v125
    %v411 = vunpack.c.l.b16 %v126
    %v412 = vunpack.c.l.b16 %v127
    %v413 = vunpack.c.l.b16 %v128
    %v414 = vunpack.c.l.b16 %v129
    %v415 = vunpack.c.l.b16 %v130
    %v416 = vunpack.c.l.b16 %v131
    %v417 = vunpack.c.l.b16 %v132
    %v418 = vunpack.c.l.b16 %v133
    %v419 = vunpack.c.l.b16 %v134
    %v420 = vunpack.c.l.b16 %v135
    %v421 = vunpack.c.l.b16 %v136
    %v422 = vunpack.c.l.b16 %v137
    %v423 = vunpack.c.l.b16 %v138
    %v424 = vunpack.c.l.b16 %v139
    %v425 = vunpack.c.l.b16 %v140
    %v426 = vunpack.c.l.b16 %v141
    %v427 = vunpack.c.l.b16 %v142
    %v428 = vunpack.c.l.b16 %v143
    %v429 = vunpack.c.l.b16 %v144
    %v430 = vunpack.c.l.b16 %v145
    %v431 = vunpack.c.l.b16 %v146
    %v432 = vunpack.c.l.b16 %v147
    %v433 = vunpack.c.l.b16 %v148
    %v434 = vunpack.c.l.b16 %v149
    %v435 = vunpack.c.l.b16 %v150
    %v436 = vunpack.c.l.b16 %v151
    %v437 = vunpack.c.l.b16 %v152
    %v438 = vunpack.c.l.b16 %v153
    %v439 = vunpack.c.l.b16 %v154
    %v440 = vunpack.c.l.b16 %v155
    %v441 = vunpack.c.l.b16 %v156
    %v442 = vunpack.c.l.b16 %v157
    %v443 = vunpack.c.l.b16 %v158
    %v444 = vunpack.c.l.b16 %v159
    %v445 = vunpack.c.l.b16 %v160
    %v446 = vunpack.c.l.b16 %v161
    %v447 = vunpack.c.l.b16 %v162
    %v448 = vunpack.c.l.b16 %v163
    %v449 = vunpack.c.l.b16 %v164
    %v450 = vunpack.c.l.b16 %v165
    %v451 = vunpack.c.l.b16 %v166
    %v452 = vunpack.c.l.b16 %v167
    %v453 = vunpack.c.l.b16 %v168
    %v454 = vunpack.c.l.b16 %v169
    %v455 = vunpack.c.l.b16 %v170
    %v456 = vunpack.c.l.b16 %v171
    %v457 = vunpack.c.l.b16 %v172
    %v458 = vunpack.c.l.b16 %v173
    %v459 = vunpack.c.l.b16 %v174
    %v460 = vunpack.c.l.b16 %v175
    %v461 = vunpack.c.l.b16 %v176
    %v462 = vunpack.c.l.b16 %v177
    %v463 = vunpack.c.l.b16 %v178
    %v464 = vunpack.c.l.b16 %v179
    %v465 = vunpack.c.l.b16 %v180
    %v466 = vunpack.c.l.b16 %v181
    %v467 = vunpack.c.l.b16 %v182
    %v468 = vunpack.c.l.b16 %v183
    %v469 = vunpack.c.l.b16 %v184
    %v470 = vunpack.c.l.b16 %v185
    %v471 = vunpack.c.l.b16 %v186
    %v472 = vunpack.c.l.b16 %v187
    %v473 = vunpack.c.l.b16 %v188
    %v474 = vunpack.c.l.b16 %v189
    %v475 = vunpack.c.l.b16 %v190
    %v476 = vunpack.c.l.b16 %v191
    %v477 = vunpack.c.l.b16 %v192
    %v478 = vunpack.c.l.b16 %v193
    %v479 = vunpack.c.l.b16 %v194
    %v480 = vunpack.c.l.b16 %v195
    %v481 = vunpack.c.l.b16 %v196
    %v482 = vunpack.c.l.b16 %v197
    %v483 = vunpack.c.l.b16 %v198
    %v484 = vunpack.c.l.b16 %v199
    %v485 = vunpack.c.l.b16 %v200
    %v486 = vunpack.c.l.b16 %v201
    %v487 = vunpack.c.l.b16 %v202
    %v488 = vunpack.c.l.b16 %v203
    %v489 = vunpack.c.l.b16 %v204
    %v490 = vunpack.c.l.b16 %v205
    %v491 = vunpack.c.l.b16 %v206
    %v492 = vunpack.c.l.b16 %v207
    %v493 = vunpack.c.l.b16 %v208
    %v494 = vunpack.c.l.b16 %v209
    %v495 = vunpack.c.l.b16 %v210
    %v496 = vunpack.c.l.b16 %v211
    %v497 = vunpack.c.l.b16 %v212
    %v498 = vunpack.c.l.b16 %v213
    %v499 = vunpack.c.l.b16 %v214
    %v500 = vunpack.c.l.b16 %v215
    %v501 = vpack.c.b16 %v374, %v373
    %v502 = vpack.c.b16 %v376, %v375
    %v503 = vpack.c.b16 %v378, %v377
    %v504 = vpack.c.b16 %v380, %v379
    %v505 = vpack.c.b16 %v382, %v381
    %v506 = vpack.c.b16 %v384, %v383
    %v507 = vpack.c.b16 %v386, %v385
    %v508 = vpack.c.b16 %v388, %v387
    %v509 = vpack.c.b16 %v390, %v389
    %v510 = vpack.c.b16 %v392, %v391
    %v511 = vpack.c.b16 %v394, %v393
    %v512 = vpack.c.b16 %v396, %v395
    %v513 = vpack.c.b16 %v398, %v397
    %v514 = vpack.c.b16 %v400, %v399
    %v515 = vpack.c.b16 %v402, %v401
    %v516 = vpack.c.b16 %v404, %v403
    %v517 = vpack.c.b16 %v406, %v405
    %v518 = vpack.c.b16 %v408, %v407
    %v519 = vpack.c.b16 %v410, %v409
    %v520 = vpack.c.b16 %v412, %v411
    %v521 = vpack.c.b16 %v414, %v413
    %v522 = vpack.c.b16 %v416, %v415
    %v523 = vpack.c.b16 %v418, %v417
    %v524 = vpack.c.b16 %v420, %v419
    %v525 = vpack.c.b16 %v422, %v421
    %v526 = vpack.c.b16 %v424, %v423
    %v527 = vpack.c.b16 %v426, %v425
    %v528 = vpack.c.b16 %v428, %v427
    %v529 = vpack.c.b16 %v430, %v429
    %v530 = vpack.c.b16 %v432, %v431
    %v531 = vpack.c.b16 %v434, %v433
    %v532 = vpack.c.b16 %v436, %v435
    %v533 = vpack.c.b16 %v438, %v437
    %v534 = vpack.c.b16 %v440, %v439
    %v535 = vpack.c.b16 %v442, %v441
    %v536 = vpack.c.b16 %v444, %v443
    %v537 = vpack.c.b16 %v446, %v445
    %v538 = vpack.c.b16 %v448, %v447
    %v539 = vpack.c.b16 %v450, %v449
    %v540 = vpack.c.b16 %v452, %v451
    %v541 = vpack.c.b16 %v454, %v453
    %v542 = vpack.c.b16 %v456, %v455
    %v543 = vpack.c.b16 %v458, %v457
    %v544 = vpack.c.b16 %v460, %v459
    %v545 = vpack.c.b16 %v462, %v461
    %v546 = vpack.c.b16 %v464, %v463
    %v547 = vpack.c.b16 %v466, %v465
    %v548 = vpack.c.b16 %v468, %v467
    %v549 = vpack.c.b16 %v470, %v469
    %v550 = vpack.c.b16 %v472, %v471
    %v551 = vpack.c.b16 %v474, %v473
    %v552 = vpack.c.b16 %v476, %v475
    %v553 = vpack.c.b16 %v478, %v477
    %v554 = vpack.c.b16 %v480, %v479
    %v555 = vpack.c.b16 %v482, %v481
    %v556 = vpack.c.b16 %v484, %v483
    %v557 = vpack.c.b16 %v486, %v485
    %v558 = vpack.c.b16 %v488, %v487
    %v559 = vpack.c.b16 %v490, %v489
    %v560 = vpack.c.b16 %v492, %v491
    %v561 = vpack.c.b16 %v494, %v493
    %v562 = vpack.c.b16 %v496, %v495
    %v563 = vpack.c.b16 %v498, %v497
    %v564 = vpack.c.b16 %v500, %v499
    %629 = vmatprep.subr.bf16.mxu0 0
    %630 = vmatpush1.bf16.msra.mxu0 %v501
    %631 = vmatprep.subr.bf16.mxu0 0
    %632 = vmatpush1.bf16.msra.mxu0 %v502
    %633 = vmatprep.subr.bf16.mxu0 0
    %634 = vmatpush1.bf16.msra.mxu0 %v503
    %635 = vmatprep.subr.bf16.mxu0 0
    %636 = vmatpush1.bf16.msra.mxu0 %v504
    %637 = vmatprep.subr.bf16.mxu0 0
    %638 = vmatpush1.bf16.msra.mxu0 %v505
    %639 = vmatprep.subr.bf16.mxu0 0
    %640 = vmatpush1.bf16.msra.mxu0 %v506
    %641 = vmatprep.subr.bf16.mxu0 0
    %642 = vmatpush1.bf16.msra.mxu0 %v507
    %643 = vmatprep.subr.bf16.mxu0 0
    %644 = vmatpush1.bf16.msra.mxu0 %v508
    %645 = vmatprep.subr.bf16.mxu0 0
    %646 = vmatpush1.bf16.msra.mxu0 %v509
    %647 = vmatprep.subr.bf16.mxu0 0
    %648 = vmatpush1.bf16.msra.mxu0 %v510
    %649 = vmatprep.subr.bf16.mxu0 0
    %650 = vmatpush1.bf16.msra.mxu0 %v511
    %651 = vmatprep.subr.bf16.mxu0 0
    %652 = vmatpush1.bf16.msra.mxu0 %v512
    %653 = vmatprep.subr.bf16.mxu0 0
    %654 = vmatpush1.bf16.msra.mxu0 %v513
    %655 = vmatprep.subr.bf16.mxu0 0
    %656 = vmatpush1.bf16.msra.mxu0 %v514
    %657 = vmatprep.subr.bf16.mxu0 0
    %658 = vmatpush1.bf16.msra.mxu0 %v515
    %659 = vmatprep.subr.bf16.mxu0 0
    %660 = vmatpush1.bf16.msra.mxu0 %v516
    %661 = vmatprep.mubr.bf16.mxu0 %v230
    %662 = vmatmul.mubr.bf16.gmra.mrb[0].mxu0 %v229
    %v663 = vpop.f32.mrb[0].mxu0
    %v664 = vadd.f32 %v216, %v663
    %v665 = vpop.f32.mrb[0].mxu0
    %v666 = vpop.f32.mrb[0].mxu0
    %v667 = vpop.f32.mrb[0].mxu0
    %668 = vdwg.mxu0
    %669 = vmatprep.subr.bf16.mxu0 0
    %670 = vmatpush1.bf16.msra.mxu0 %v517
    %671 = vmatprep.subr.bf16.mxu0 0
    %672 = vmatpush1.bf16.msra.mxu0 %v518
    %673 = vmatprep.subr.bf16.mxu0 0
    %674 = vmatpush1.bf16.msra.mxu0 %v519
    %675 = vmatprep.subr.bf16.mxu0 0
    %676 = vmatpush1.bf16.msra.mxu0 %v520
    %677 = vmatprep.subr.bf16.mxu0 0
    %678 = vmatpush1.bf16.msra.mxu0 %v521
    %679 = vmatprep.subr.bf16.mxu0 0
    %680 = vmatpush1.bf16.msra.mxu0 %v522
    %681 = vmatprep.subr.bf16.mxu0 0
    %682 = vmatpush1.bf16.msra.mxu0 %v523
    %683 = vmatprep.subr.bf16.mxu0 0
    %684 = vmatpush1.bf16.msra.mxu0 %v524
    %685 = vmatprep.subr.bf16.mxu0 0
    %686 = vmatpush1.bf16.msra.mxu0 %v525
    %687 = vmatprep.subr.bf16.mxu0 0
    %688 = vmatpush1.bf16.msra.mxu0 %v526
    %689 = vmatprep.subr.bf16.mxu0 0
    %690 = vmatpush1.bf16.msra.mxu0 %v527
    %691 = vmatprep.subr.bf16.mxu0 0
    %692 = vmatpush1.bf16.msra.mxu0 %v528
    %693 = vmatprep.subr.bf16.mxu0 0
    %694 = vmatpush1.bf16.msra.mxu0 %v529
    %695 = vmatprep.subr.bf16.mxu0 0
    %696 = vmatpush1.bf16.msra.mxu0 %v530
    %697 = vmatprep.subr.bf16.mxu0 0
    %698 = vmatpush1.bf16.msra.mxu0 %v531
    %699 = vmatprep.subr.bf16.mxu0 0
    %700 = vmatpush1.bf16.msra.mxu0 %v532
    %701 = vmatprep.mubr.bf16.mxu0 %v232
    %702 = vmatmul.mubr.bf16.gmra.mrb[0].mxu0 %v231
    %v703 = vpop.f32.mrb[0].mxu0
    %v704 = vadd.f32 %v664, %v703
    %v705 = vpop.f32.mrb[0].mxu0
    %v706 = vpop.f32.mrb[0].mxu0
    %v707 = vpop.f32.mrb[0].mxu0
    %708 = vdwg.mxu0
    %709 = vmatprep.subr.bf16.mxu0 0
    %710 = vmatpush1.bf16.msra.mxu0 %v533
    %711 = vmatprep.subr.bf16.mxu0 0
    %712 = vmatpush1.bf16.msra.mxu0 %v534
    %713 = vmatprep.subr.bf16.mxu0 0
    %714 = vmatpush1.bf16.msra.mxu0 %v535
    %715 = vmatprep.subr.bf16.mxu0 0
    %716 = vmatpush1.bf16.msra.mxu0 %v536
    %717 = vmatprep.subr.bf16.mxu0 0
    %718 = vmatpush1.bf16.msra.mxu0 %v537
    %719 = vmatprep.subr.bf16.mxu0 0
    %720 = vmatpush1.bf16.msra.mxu0 %v538
    %721 = vmatprep.subr.bf16.mxu0 0
    %722 = vmatpush1.bf16.msra.mxu0 %v539
    %723 = vmatprep.subr.bf16.mxu0 0
    %724 = vmatpush1.bf16.msra.mxu0 %v540
    %725 = vmatprep.subr.bf16.mxu0 0
    %726 = vmatpush1.bf16.msra.mxu0 %v541
    %727 = vmatprep.subr.bf16.mxu0 0
    %728 = vmatpush1.bf16.msra.mxu0 %v542
    %729 = vmatprep.subr.bf16.mxu0 0
    %730 = vmatpush1.bf16.msra.mxu0 %v543
    %731 = vmatprep.subr.bf16.mxu0 0
    %732 = vmatpush1.bf16.msra.mxu0 %v544
    %733 = vmatprep.subr.bf16.mxu0 0
    %734 = vmatpush1.bf16.msra.mxu0 %v545
    %735 = vmatprep.subr.bf16.mxu0 0
    %736 = vmatpush1.bf16.msra.mxu0 %v546
    %737 = vmatprep.subr.bf16.mxu0 0
    %738 = vmatpush1.bf16.msra.mxu0 %v547
    %739 = vmatprep.subr.bf16.mxu0 0
    %740 = vmatpush1.bf16.msra.mxu0 %v548
    %741 = vmatprep.mubr.bf16.mxu0 %v234
    %742 = vmatmul.mubr.bf16.gmra.mrb[0].mxu0 %v233
    %v743 = vpop.f32.mrb[0].mxu0
    %v744 = vadd.f32 %v704, %v743
    %v745 = vpop.f32.mrb[0].mxu0
    %v746 = vpop.f32.mrb[0].mxu0
    %v747 = vpop.f32.mrb[0].mxu0
    %748 = vdwg.mxu0
    %749 = vmatprep.subr.bf16.mxu0 0
    %750 = vmatpush1.bf16.msra.mxu0 %v549
    %751 = vmatprep.subr.bf16.mxu0 0
    %752 = vmatpush1.bf16.msra.mxu0 %v550
    %753 = vmatprep.subr.bf16.mxu0 0
    %754 = vmatpush1.bf16.msra.mxu0 %v551
    %755 = vmatprep.subr.bf16.mxu0 0
    %756 = vmatpush1.bf16.msra.mxu0 %v552
    %757 = vmatprep.subr.bf16.mxu0 0
    %758 = vmatpush1.bf16.msra.mxu0 %v553
    %759 = vmatprep.subr.bf16.mxu0 0
    %760 = vmatpush1.bf16.msra.mxu0 %v554
    %761 = vmatprep.subr.bf16.mxu0 0
    %762 = vmatpush1.bf16.msra.mxu0 %v555
    %763 = vmatprep.subr.bf16.mxu0 0
    %764 = vmatpush1.bf16.msra.mxu0 %v556
    %765 = vmatprep.subr.bf16.mxu0 0
    %766 = vmatpush1.bf16.msra.mxu0 %v557
    %767 = vmatprep.subr.bf16.mxu0 0
    %768 = vmatpush1.bf16.msra.mxu0 %v558
    %769 = vmatprep.subr.bf16.mxu0 0
    %770 = vmatpush1.bf16.msra.mxu0 %v559
    %771 = vmatprep.subr.bf16.mxu0 0
    %772 = vmatpush1.bf16.msra.mxu0 %v560
    %773 = vmatprep.subr.bf16.mxu0 0
    %774 = vmatpush1.bf16.msra.mxu0 %v561
    %775 = vmatprep.subr.bf16.mxu0 0
    %776 = vmatpush1.bf16.msra.mxu0 %v562
    %777 = vmatprep.subr.bf16.mxu0 0
    %778 = vmatpush1.bf16.msra.mxu0 %v563
    %779 = vmatprep.subr.bf16.mxu0 0
    %780 = vmatpush1.bf16.msra.mxu0 %v564
    %781 = vmatprep.mubr.bf16.mxu0 %v236
    %782 = vmatmul.mubr.bf16.gmra.mrb[0].mxu0 %v235
    %v783 = vpop.f32.mrb[0].mxu0
    %v784 = vadd.f32 %v744, %v783
    %v785 = vpop.f32.mrb[0].mxu0
    %v786 = vpop.f32.mrb[0].mxu0
    %v787 = vpop.f32.mrb[0].mxu0
    %788 = vdwg.mxu0
    %vm789 = vcmp.gt.f32.partialorder %v784, 0.0
    %v790 = vmul.f32 %v784, 0.1
    %v791 = vsel %vm789, %v784, %v790
    %v792 = vpack.c.bf16 %v791, %v791
    %v793 = vld [vmem:[#allocation8] sm:$0xff]
    %v794 = vld [vmem:[#allocation8 + $0x8] sm:$0xff]
    %v795 = vld [vmem:[#allocation8 + $0x10] sm:$0xff]
    %v796 = vld [vmem:[#allocation8 + $0x18] sm:$0xff]
    %v797 = vld [vmem:[#allocation8 + $0x20] sm:$0xff]
    %v798 = vld [vmem:[#allocation8 + $0x28] sm:$0xff]
    %v799 = vld [vmem:[#allocation8 + $0x30] sm:$0xff]
    %v800 = vld [vmem:[#allocation8 + $0x38] sm:$0xff]
    %v801 = vld [vmem:[#allocation8 + $0x40] sm:$0xff]
    %v802 = vld [vmem:[#allocation8 + $0x48] sm:$0xff]
    %v803 = vld [vmem:[#allocation8 + $0x50] sm:$0xff]
    %v804 = vld [vmem:[#allocation8 + $0x58] sm:$0xff]
    %v805 = vld [vmem:[#allocation8 + $0x60] sm:$0xff]
    %v806 = vld [vmem:[#allocation8 + $0x68] sm:$0xff]
    %v807 = vld [vmem:[#allocation8 + $0x70] sm:$0xff]
    %v808 = vld [vmem:[#allocation8 + $0x78] sm:$0xff]
    %v809 = vld [vmem:[#allocation10] sm:$0xff]
    %v810 = vld [vmem:[#allocation10 + $0x8] sm:$0xff]
    %v827 = vunpack.c.l.b16 %v793
    %v828 = vunpack.c.h.b16 %v793
    %v829 = vunpack.c.l.b16 %v794
    %v830 = vunpack.c.h.b16 %v794
    %v831 = vunpack.c.l.b16 %v795
    %v832 = vunpack.c.h.b16 %v795
    %v833 = vunpack.c.l.b16 %v796
    %v834 = vunpack.c.h.b16 %v796
    %v835 = vunpack.c.l.b16 %v797
    %v836 = vunpack.c.h.b16 %v797
    %v837 = vunpack.c.l.b16 %v798
    %v838 = vunpack.c.h.b16 %v798
    %v839 = vunpack.c.l.b16 %v799
    %v840 = vunpack.c.h.b16 %v799
    %v841 = vunpack.c.l.b16 %v800
    %v842 = vunpack.c.h.b16 %v800
    %v843 = vunpack.c.l.b16 %v801
    %v844 = vunpack.c.h.b16 %v801
    %v845 = vunpack.c.l.b16 %v802
    %v846 = vunpack.c.h.b16 %v802
    %v847 = vunpack.c.l.b16 %v803
    %v848 = vunpack.c.h.b16 %v803
    %v849 = vunpack.c.l.b16 %v804
    %v850 = vunpack.c.h.b16 %v804
    %v851 = vunpack.c.l.b16 %v805
    %v852 = vunpack.c.h.b16 %v805
    %v853 = vunpack.c.l.b16 %v806
    %v854 = vunpack.c.h.b16 %v806
    %v855 = vunpack.c.l.b16 %v807
    %v856 = vunpack.c.h.b16 %v807
    %v857 = vunpack.c.l.b16 %v808
    %v858 = vunpack.c.h.b16 %v808
    %v859 = vpack.c.b16 %v829, %v827
    %v860 = vpack.c.b16 %v830, %v828
    %v861 = vpack.c.b16 %v833, %v831
    %v862 = vpack.c.b16 %v834, %v832
    %v863 = vpack.c.b16 %v837, %v835
    %v864 = vpack.c.b16 %v838, %v836
    %v865 = vpack.c.b16 %v841, %v839
    %v866 = vpack.c.b16 %v842, %v840
    %v867 = vpack.c.b16 %v845, %v843
    %v868 = vpack.c.b16 %v846, %v844
    %v869 = vpack.c.b16 %v849, %v847
    %v870 = vpack.c.b16 %v850, %v848
    %v871 = vpack.c.b16 %v853, %v851
    %v872 = vpack.c.b16 %v854, %v852
    %v873 = vpack.c.b16 %v857, %v855
    %v874 = vpack.c.b16 %v858, %v856
    %891 = vmatprep.subr.bf16.mxu0 %v860
    %892 = vmatpush1.bf16.msra.mxu0 %v859
    %893 = vmatprep.subr.bf16.mxu0 %v862
    %894 = vmatpush1.bf16.msra.mxu0 %v861
    %895 = vmatprep.subr.bf16.mxu0 %v864
    %896 = vmatpush1.bf16.msra.mxu0 %v863
    %897 = vmatprep.subr.bf16.mxu0 %v866
    %898 = vmatpush1.bf16.msra.mxu0 %v865
    %899 = vmatprep.subr.bf16.mxu0 %v868
    %900 = vmatpush1.bf16.msra.mxu0 %v867
    %901 = vmatprep.subr.bf16.mxu0 %v870
    %902 = vmatpush1.bf16.msra.mxu0 %v869
    %903 = vmatprep.subr.bf16.mxu0 %v872
    %904 = vmatpush1.bf16.msra.mxu0 %v871
    %905 = vmatprep.subr.bf16.mxu0 %v874
    %906 = vmatpush1.bf16.msra.mxu0 %v873
    %907 = vmatprep.subr.bf16.mxu0 0
    %908 = vmatpush1.bf16.msra.mxu0 0
    %909 = vmatprep.subr.bf16.mxu0 0
    %910 = vmatpush1.bf16.msra.mxu0 0
    %911 = vmatprep.subr.bf16.mxu0 0
    %912 = vmatpush1.bf16.msra.mxu0 0
    %913 = vmatprep.subr.bf16.mxu0 0
    %914 = vmatpush1.bf16.msra.mxu0 0
    %915 = vmatprep.subr.bf16.mxu0 0
    %916 = vmatpush1.bf16.msra.mxu0 0
    %917 = vmatprep.subr.bf16.mxu0 0
    %918 = vmatpush1.bf16.msra.mxu0 0
    %919 = vmatprep.subr.bf16.mxu0 0
    %920 = vmatpush1.bf16.msra.mxu0 0
    %921 = vmatprep.subr.bf16.mxu0 0
    %922 = vmatpush1.bf16.msra.mxu0 0
    %923 = vmatprep.mubr.bf16.mxu0 0
    %924 = vmatmul.mubr.bf16.gmra.mrb[0].mxu0 %v792
    %v925 = vpop.f32.mrb[0].mxu0
    %v926 = vadd.f32 %v809, %v925
    %v927 = vpop.f32.mrb[0].mxu0
    %v928 = vadd.f32 %v810, %v927
    %v929 = vpop.f32.mrb[0].mxu0
    %v930 = vpop.f32.mrb[0].mxu0
    %931 = vdwg.mxu0
    %v932 = vmul.f32 %v926, 0.5
    %v933 = vmul.f32 %v928, 0.5
    %v934 = vtanh.pop %v932
    %v935 = vtanh.pop %v933
    %v936 = vmul.f32 %v934, 0.5
    %v937 = vmul.f32 %v935, 0.5
    %v938 = vadd.f32 %v936, 0.5
    %v939 = vadd.f32 %v937, 0.5
    %940 = vst [vmem:[#allocation11] sm:$0xff] %v938
    %941 = vst [vmem:[#allocation11 + $0x8] sm:$0xff] %v939
    // Predicated region
    $region42: #{tpu_custom_call.1} parent=1 // pred_check
      _
    $region43: #{tpu_custom_call.1} parent=1 // pred_check_branch
      %943 = sbr.rel (0) target = $region45
    $region44: #{tpu_custom_call.1} parent=1 // pred_region
      %s945 = ssub.s32 256, 256
      %946 = vsyncadd [#allocation4], %s945
      %s948 = sshll.u32 [#allocation11], 4
      %s949 = int_to_ptr.vmem [resolvable:$true] %s948
      %951 = dma.vmem_to_hbm [thread:$0]  %s949, 256, %s5, [#allocation4]
    $region45: #{tpu_custom_call.1} parent=1 // pred_fallthru
      _
    // Predicated region
    $region46: #{tpu_custom_call.1} parent=1 // pred_check
      _
    $region47: #{tpu_custom_call.1} parent=1 // pred_check_branch
      %953 = sbr.rel (0) target = $region49
    $region48: #{tpu_custom_call.1} parent=1 // pred_region
      %954 = dma.done [#allocation4], 256
    $region49: #{tpu_custom_call.1} parent=1 // pred_fallthru
      _
    %955 = vsyncpa [#allocation3], 1
    %956 = vsyncpa [#allocation6], 1
    %957 = vsyncpa [#allocation9], 1
    %958 = vsyncpa [#allocation4], 1

</llo_original>
